<compile_context>
chip_gen: v5e
topology: v5e:2x2
jax: 0.10.0
libtpu: 0.0.40
codegen_flags: <defaults>
</compile_context>

<pallas_src>
import jax
import jax.numpy as jnp
import numpy as np
from jax.experimental import pallas as pl
from jax.experimental.pallas import tpu as pltpu

NUM_POS_FEATS = 32   # num_pos_feats (128 in the original ViDT config)
NUM_EMBED = 150      # nn.Embedding(150, num_pos_feats)


def _pos_embed_kernel(colT_ref, rowT_ref, ecol_ref, erow_ref, out_ref):
    """One (tC, H*W) lane-dense channel-major block of the positional embedding.

    colT_ref: (tC, W)    rows of col_embed(arange(W)).T for this channel block
    rowT_ref: (tC, H)    rows of row_embed(arange(H)).T for this channel block
    ecol_ref: (W, H*W)   one-hot expansion, E_col[w, k] = (k %  W == w)
    erow_ref: (H, H*W)   one-hot expansion, E_row[h, k] = (k // W == h)
    out_ref : (tC, H*W)  block of the (2F, H*W) output
      global channels [0, F)  : out[c, h*W+w] = x_emb[w, c]
      global channels [F, 2F) : out[c, h*W+w] = y_emb[h, c]
    """
    half = pl.program_id(0)          # 0 -> col/x half, 1 -> row/y half

    @pl.when(half == 0)
    def _():
        # Exact one-hot selection on the idle MXU; single unmasked dense store.
        out_ref[...] = jnp.dot(
            colT_ref[...], ecol_ref[...],
            preferred_element_type=jnp.float32).astype(out_ref.dtype)

    @pl.when(half == 1)
    def _():
        out_ref[...] = jnp.dot(
            rowT_ref[...], erow_ref[...],
            preferred_element_type=jnp.float32).astype(out_ref.dtype)


def _pad2(rows, cols):
    """Padded element count of a 2-D f32/bf16 tile under the (8, 128) layout."""
    return (-(-rows // 8) * 8) * (-(-cols // 128) * 128)


def _plan_blocks(F, H, W, out_itemsize, total_budget_bytes=40 * 1024 * 1024):
    """Pick the channel block tC and a matching VMEM limit.

    tC divides F (a block never straddles the col/row halves) and is a
    multiple of 8 (sublane tile).  The double-buffered output block plus the
    (constant-index, but double-buffered) expansion matrices and embedding
    tiles must fit the budget, chosen to be safe on v7x (64 MiB physical VMEM)
    while big enough that the largest ViDT level needs only a handful of grid
    steps on v5e/v6e (128 MiB VMEM).
    """
    HW = H * W
    cands = [c for c in range(F, 0, -1) if F % c == 0 and c % 8 == 0]
    if not cands:
        raise ValueError("num_pos_feats must be a multiple of 8 for this kernel")

    def footprint(c):
        out_blk = 2 * _pad2(c, HW) * out_itemsize            # double-buffered output
        e_mats = 2 * 4 * (_pad2(W, HW) + _pad2(H, HW))        # E_col + E_row (f32)
        emb_blk = 2 * 4 * (_pad2(c, W) + _pad2(c, H))         # colT/rowT tiles (f32)
        return out_blk + e_mats + emb_blk

    tC = next((c for c in cands if footprint(c) <= total_budget_bytes), cands[-1])
    vmem_limit = max(footprint(tC) + (2 << 20), 8 << 20)      # +2 MiB slack
    return tC, int(vmem_limit)


def position_embedding_learned(image_tensor, col_weight, row_weight,
                               out_dtype=None, return_flat=False):
    """Forward pass of PositionEmbeddingLearned.

    image_tensor : (N, C, H, W) -- only H, W are used (as in PyTorch).
    col_weight   : (150, F)     -- col_embed.weight
    row_weight   : (150, F)     -- row_embed.weight
    returns      : (1, 2F, H, W)  (or (2F, H*W) if return_flat=True)
    """
    H, W = (int(s) for s in image_tensor.shape[-2:])
    F = int(col_weight.shape[-1])
    if H > row_weight.shape[0] or W > col_weight.shape[0]:
        # PyTorch's nn.Embedding would raise on out-of-range indices.
        raise ValueError("H and W must not exceed the embedding table size (150).")
    if out_dtype is None:
        out_dtype = jnp.result_type(col_weight.dtype, row_weight.dtype)
    HW = H * W

    # One-time layout prep on the tiny tables (hoisted out of the grid loop):
    # channel-major views of col_embed(arange(W)) / row_embed(arange(H)).
    colT = jnp.transpose(col_weight[:W].astype(jnp.float32))   # (F, W)
    rowT = jnp.transpose(row_weight[:H].astype(jnp.float32))   # (F, H)

    # One-hot expansion matrices (built with numpy, constant per (H, W) level).
    k = np.arange(HW)
    e_col = jnp.asarray((k[None, :] % W) == np.arange(W)[:, None],
                        dtype=jnp.float32)                      # (W, H*W)
    e_row = jnp.asarray((k[None, :] // W) == np.arange(H)[:, None],
                        dtype=jnp.float32)                      # (H, H*W)

    out_itemsize = jnp.dtype(out_dtype).itemsize
    tC, vmem_limit = _plan_blocks(F, H, W, out_itemsize)
    nb = F // tC                     # channel blocks per half
    grid = (2, nb)                   # (which half, channel block within half)

    flops = 2 * F * (W + H) * HW     # one-hot expansion matmuls (MXU is idle anyway)
    bytes_out = 2 * F * HW * out_itemsize
    bytes_in = 4 * (F * W + F * H + W * HW + H * HW)
    cost = pl.CostEstimate(flops=flops, transcendentals=0,
                           bytes_accessed=bytes_out + bytes_in)

    pos_flat = pl.pallas_call(
        _pos_embed_kernel,
        out_shape=jax.ShapeDtypeStruct((2 * F, HW), out_dtype),
        grid_spec=pltpu.PrefetchScalarGridSpec(
            num_scalar_prefetch=0,
            grid=grid,
            in_specs=[
                # Inactive half's tile collapses to block 0 -> no per-step re-fetch.
                pl.BlockSpec((tC, W), lambda h, j: (j * (1 - h), 0)),   # colT block
                pl.BlockSpec((tC, H), lambda h, j: (j * h, 0)),         # rowT block
                pl.BlockSpec((W, HW), lambda h, j: (0, 0)),             # E_col (fetched once)
                pl.BlockSpec((H, HW), lambda h, j: (0, 0)),             # E_row (fetched once)
            ],
            out_specs=pl.BlockSpec((tC, HW), lambda h, j: (h * nb + j, 0)),
        ),
        compiler_params=pltpu.CompilerParams(
            dimension_semantics=("parallel", "parallel"),
            vmem_limit_bytes=vmem_limit,
        ),
        cost_estimate=cost,
    )(colT, rowT, e_col, e_row)

    if return_flat:
        # Channel-major tokens (2F, H*W): hand straight to a consumer that
        # flattens the spatial dims anyway (DETR/ViDT-style), avoiding any
        # further HBM relayout.
        return pos_flat
    # (2F, H*W) -> (1, 2F, H, W): tiny wrapper-side reshape to match PyTorch.
    return pos_flat.reshape(1, 2 * F, H, W)


def _reference(image_tensor, col_weight, row_weight):
    """Pure-JAX reference mirroring the PyTorch forward."""
    H, W = image_tensor.shape[-2:]
    x_emb = col_weight[:W]                                # (W, F)
    y_emb = row_weight[:H]                                # (H, F)
    pos = jnp.concatenate(
        [jnp.broadcast_to(x_emb[None, :, :], (H, W, x_emb.shape[-1])),
         jnp.broadcast_to(y_emb[:, None, :], (H, W, y_emb.shape[-1]))],
        axis=-1)
    return jnp.transpose(pos, (2, 0, 1))[None]


if __name__ == "__main__":
    key = jax.random.PRNGKey(0)
    k_img, k_row, k_col = jax.random.split(key, 3)

    # Small NCHW input consistent with the module's forward (only H, W used).
    x = jax.random.normal(k_img, (2, 4, 16, 16), dtype=jnp.float32)

    # Deterministic init matching nn.init.uniform_ (U[0, 1)).
    row_weight = jax.random.uniform(k_row, (NUM_EMBED, NUM_POS_FEATS), dtype=jnp.float32)
    col_weight = jax.random.uniform(k_col, (NUM_EMBED, NUM_POS_FEATS), dtype=jnp.float32)

    pos = position_embedding_learned(x, col_weight, row_weight)
    pos = jax.block_until_ready(pos)

    ref = _reference(x, col_weight, row_weight)
    assert pos.shape == (1, 2 * NUM_POS_FEATS, 16, 16), pos.shape
    assert jnp.allclose(pos, ref, rtol=1e-6, atol=1e-6), "mismatch vs reference"

    print("KERNEL_OK")
</pallas_src>

<mosaic_0001>
module attributes {stable_mosaic.version = 11 : i64} {
  func.func @_pos_embed_kernel(%arg0: i32, %arg1: i32, %arg2: memref<32x16xf32, #tpu.memory_space<vmem>>, %arg3: memref<32x16xf32, #tpu.memory_space<vmem>>, %arg4: memref<16x256xf32, #tpu.memory_space<vmem>>, %arg5: memref<16x256xf32, #tpu.memory_space<vmem>>, %arg6: memref<32x256xf32, #tpu.memory_space<vmem>>) attributes {dimension_semantics = [#tpu.dimension_semantics<parallel>, #tpu.dimension_semantics<parallel>], iteration_bounds = array<i64: 2, 1>, scalar_prefetch = 0 : i64, scratch_operands = 0 : i64, tpu.core_type = #tpu.core_type<tc>, window_params = [{transform_indices = @transform_0, window_bounds = array<i64: 32, 16>}, {transform_indices = @transform_1, window_bounds = array<i64: 32, 16>}, {pipeline_mode = #tpu.pipeline_mode<synchronous>, transform_indices = @transform_2, window_bounds = array<i64: 16, 256>}, {pipeline_mode = #tpu.pipeline_mode<synchronous>, transform_indices = @transform_3, window_bounds = array<i64: 16, 256>}, {transform_indices = @transform_4, window_bounds = array<i64: 32, 256>}]} {
    %c0_i32 = arith.constant 0 : i32
    %0 = arith.cmpi eq, %arg0, %c0_i32 : i32
    %1 = arith.extui %0 : i1 to i32
    %c0_i32_0 = arith.constant 0 : i32
    %2 = arith.cmpi ne, %1, %c0_i32_0 : i32
    scf.if %2 {
      %c0 = arith.constant 0 : index
      %c0_2 = arith.constant 0 : index
      %6 = vector.load %arg2[%c0, %c0_2] : memref<32x16xf32, #tpu.memory_space<vmem>>, vector<32x16xf32>
      %c0_3 = arith.constant 0 : index
      %c0_4 = arith.constant 0 : index
      %7 = vector.load %arg4[%c0_3, %c0_4] : memref<16x256xf32, #tpu.memory_space<vmem>>, vector<16x256xf32>
      %cst = arith.constant dense<0.000000e+00> : vector<32x256xf32>
      %8 = tpu.matmul %6, %7, %cst {dimension_numbers = #tpu.dot_dimension_numbers<[1], [0], [0], [1], [0, 0, 1, 1], [], []>} : vector<32x16xf32>, vector<16x256xf32>, vector<32x256xf32> -> vector<32x256xf32>
      %c0_5 = arith.constant 0 : index
      %c0_6 = arith.constant 0 : index
      %9 = vector.load %arg6[%c0_5, %c0_6] : memref<32x256xf32, #tpu.memory_space<vmem>>, vector<32x256xf32>
      tpu.vector_store %arg6[%c0_5, %c0_6], %8 {strides = array<i32>} : memref<32x256xf32, #tpu.memory_space<vmem>>, vector<32x256xf32>,
    } else {
    }
    %c1_i32 = arith.constant 1 : i32
    %3 = arith.cmpi eq, %arg0, %c1_i32 : i32
    %4 = arith.extui %3 : i1 to i32
    %c0_i32_1 = arith.constant 0 : i32
    %5 = arith.cmpi ne, %4, %c0_i32_1 : i32
    scf.if %5 {
      %c0 = arith.constant 0 : index
      %c0_2 = arith.constant 0 : index
      %6 = vector.load %arg3[%c0, %c0_2] : memref<32x16xf32, #tpu.memory_space<vmem>>, vector<32x16xf32>
      %c0_3 = arith.constant 0 : index
      %c0_4 = arith.constant 0 : index
      %7 = vector.load %arg5[%c0_3, %c0_4] : memref<16x256xf32, #tpu.memory_space<vmem>>, vector<16x256xf32>
      %cst = arith.constant dense<0.000000e+00> : vector<32x256xf32>
      %8 = tpu.matmul %6, %7, %cst {dimension_numbers = #tpu.dot_dimension_numbers<[1], [0], [0], [1], [0, 0, 1, 1], [], []>} : vector<32x16xf32>, vector<16x256xf32>, vector<32x256xf32> -> vector<32x256xf32>
      %c0_5 = arith.constant 0 : index
      %c0_6 = arith.constant 0 : index
      %9 = vector.load %arg6[%c0_5, %c0_6] : memref<32x256xf32, #tpu.memory_space<vmem>>, vector<32x256xf32>
      tpu.vector_store %arg6[%c0_5, %c0_6], %8 {strides = array<i32>} : memref<32x256xf32, #tpu.memory_space<vmem>>, vector<32x256xf32>,
    } else {
    }
    return
  }
  func.func @transform_0(%arg0: i32, %arg1: i32) -> (i32, i32) {
    %c1_i32 = arith.constant 1 : i32
    %0 = arith.subi %c1_i32, %arg0 : i32
    %1 = arith.muli %arg1, %0 : i32
    %c0_i32 = arith.constant 0 : i32
    %c0_i32_0 = arith.constant 0 : i32
    return %1, %c0_i32 : i32, i32
  }
  func.func @transform_1(%arg0: i32, %arg1: i32) -> (i32, i32) {
    %0 = arith.muli %arg1, %arg0 : i32
    %c0_i32 = arith.constant 0 : i32
    %c0_i32_0 = arith.constant 0 : i32
    return %0, %c0_i32 : i32, i32
  }
  func.func @transform_2(%arg0: i32, %arg1: i32) -> (i32, i32) {
    %c0_i32 = arith.constant 0 : i32
    %c0_i32_0 = arith.constant 0 : i32
    %c0_i32_1 = arith.constant 0 : i32
    return %c0_i32, %c0_i32_0 : i32, i32
  }
  func.func @transform_3(%arg0: i32, %arg1: i32) -> (i32, i32) {
    %c0_i32 = arith.constant 0 : i32
    %c0_i32_0 = arith.constant 0 : i32
    %c0_i32_1 = arith.constant 0 : i32
    return %c0_i32, %c0_i32_0 : i32, i32
  }
  func.func @transform_4(%arg0: i32, %arg1: i32) -> (i32, i32) {
    %c1_i32 = arith.constant 1 : i32
    %0 = arith.muli %arg0, %c1_i32 : i32
    %1 = arith.addi %0, %arg1 : i32
    %c0_i32 = arith.constant 0 : i32
    %c0_i32_0 = arith.constant 0 : i32
    return %1, %c0_i32 : i32, i32
  }
}

</mosaic_0001>

<llo_original>
// kernel: tpu_custom_call.1
$region0: #{tpu_custom_call.1}
  #allocation0 [shape = 'u32[]', space=smem, size = 0x4, offset = 0x4, fixed_abs, tag = 'smem constant byte address 0x4 - core index']
  #allocation1 [shape = 'u32[72,128]{1,0:T(1,128)}', space=vmem, size = 0x9000, scoped, tag = 'internal scratch']
  %s0 = inlined_call_operand.vmem [shape: f32[32,16], index: 0, kind: input, shape index: {}]
  %s1 = inlined_call_operand.vmem [shape: f32[32,16], index: 1, kind: input, shape index: {}]
  %s2 = inlined_call_operand.vmem [shape: f32[16,256], index: 2, kind: input, shape index: {}]
  %s3 = inlined_call_operand.vmem [shape: f32[16,256], index: 3, kind: input, shape index: {}]
  %s4 = inlined_call_operand.hbm [shape: f32[64,256], index: 4, kind: output, shape index: {}]
  %s5 = sld [smem:[#allocation0]]
  $region57: #{tpu_custom_call.1} parent=0
    _
  %s7 = ssub.s32 1, %s5
  %s8 = scalar_select 0, %s7, %s5
  $region1: #{tpu_custom_call.1} parent=0
    #allocation2 [shape = 'u8[65536]{0}', space=vmem, size = 0x10000, scoped, tag = 'output window, operand 0']
    #allocation3 [shape = 's32[2]{0}', space=sflag, size = 0x8, scoped, tag = 'scoped memory for tpu_custom_call.1']
    %9 = vsyncpa [#allocation3], 0
    %s10 = scalar_lea.sflag [#allocation3], 1
    %11 = vsyncpa %s10, 0
    loop: start=0, step=1, limit=4
    $region2: #{tpu_custom_call.1} parent=1 // loop_pre_header
      _
    $region3: #{tpu_custom_call.1} parent=1 // loop_header
      %s13 = sphi 0, %s17
      %p14 = scmp.ge.s32.totalorder %s13, 4
      %s20 = sphi 0, %s32
      %s21 = sphi 0, %s28
      %s22 = sphi 0, %s20
      %s23 = sphi 0, %s21
      %s24 = sphi 0, %s22
      %s25 = sphi 0, %s23
      %s39 = sphi 0, %s41
      %s42 = sphi 0, %s39
      %s43 = sphi 0, %s42
      %s59 = sphi 0, %s43
      %s67 = sphi 0, %s69
      %s70 = sphi 0, %s67
      %s71 = sphi 0, %s70
      %s87 = sphi 0, %s71
      %s91 = sphi 0, %s91
      %s93 = sphi 0, %s91
      %s94 = sphi 0, %s93
      %s108 = sphi 0, %s94
      %s112 = sphi 0, %s112
      %s114 = sphi 0, %s112
      %s115 = sphi 0, %s114
      %s129 = sphi 0, %s115
      %s137 = sphi 0, %s139
      %s140 = sphi 0, %s137
      %s141 = sphi 0, %s140
      %s157 = sphi 0, %s141
    $region4: #{tpu_custom_call.1} parent=1 // loop_header_branch
      %16 = sbr.rel (%p14) target = $region8
    $region5: #{tpu_custom_call.1} parent=1 // loop_body
      %s18 = ssub.s32 %s13, 1
      %s19 = ssub.s32 %s13, 2
      %s26 = sadd.s32 1, %s21
      %p27 = scmp.ge.s32.totalorder %s26, 1
      %s28 = scalar_select %p27, 0, %s26
      %s29 = sadd.s32 1, %s20
      %s30 = scalar_select %p27, %s29, %s20
      %p31 = scmp.ge.s32.totalorder %s30, 2
      %s32 = scalar_select %p31, 0, %s30
      %s33 = ssub.s32 1, %s20
      %s34 = smul.u32 %s21, %s33
      %s35 = ssub.s32 1, %s32
      %s36 = smul.u32 %s28, %s35
      %s37 = ssub.s32 %s34, %s36
      %p38 = scmp.eq.s32.totalorder %s37, 0
      %s40 = sadd.s32 %s39, 1
      %s41 = scalar_select %p38, %s39, %s40
      %p44 = pneg %p38
      %p45 = scmp.eq.s32.totalorder %s13, 1
      %p46 = por %p44, %p45
      %p47 = scmp.ne.s32.totalorder %s39, %s42
      %p48 = scmp.eq.s32.totalorder %s13, 0
      %p49 = por %p47, %p48
      %p50 = scmp.ne.s32.totalorder %s39, %s42
      %p51 = scmp.eq.s32.totalorder %s18, 1
      %p52 = por %p50, %p51
      %p53 = scmp.ne.s32.totalorder %s42, %s43
      %p54 = scmp.eq.s32.totalorder %s18, 0
      %p55 = por %p53, %p54
      %p56 = scmp.ne.s32.totalorder %s42, %s43
      %p57 = scmp.eq.s32.totalorder %s19, 1
      %p58 = por %p56, %p57
      %p60 = scmp.ne.s32.totalorder %s43, %s59
      %p61 = scmp.eq.s32.totalorder %s19, 0
      %p62 = por %p60, %p61
      %s63 = smul.u32 %s21, %s20
      %s64 = smul.u32 %s28, %s32
      %s65 = ssub.s32 %s63, %s64
      %p66 = scmp.eq.s32.totalorder %s65, 0
      %s68 = sadd.s32 %s67, 1
      %s69 = scalar_select %p66, %s67, %s68
      %p72 = pneg %p66
      %p73 = scmp.eq.s32.totalorder %s13, 1
      %p74 = por %p72, %p73
      %p75 = scmp.ne.s32.totalorder %s67, %s70
      %p76 = scmp.eq.s32.totalorder %s13, 0
      %p77 = por %p75, %p76
      %p78 = scmp.ne.s32.totalorder %s67, %s70
      %p79 = scmp.eq.s32.totalorder %s18, 1
      %p80 = por %p78, %p79
      %p81 = scmp.ne.s32.totalorder %s70, %s71
      %p82 = scmp.eq.s32.totalorder %s18, 0
      %p83 = por %p81, %p82
      %p84 = scmp.ne.s32.totalorder %s70, %s71
      %p85 = scmp.eq.s32.totalorder %s19, 1
      %p86 = por %p84, %p85
      %p88 = scmp.ne.s32.totalorder %s71, %s87
      %p89 = scmp.eq.s32.totalorder %s19, 0
      %p90 = por %p88, %p89
      %s92 = sadd.s32 %s91, 1
      %p95 = scmp.eq.s32.totalorder %s13, 1
      %p96 = scmp.ne.s32.totalorder %s91, %s93
      %p97 = scmp.eq.s32.totalorder %s13, 0
      %p98 = por %p96, %p97
      %p99 = scmp.ne.s32.totalorder %s91, %s93
      %p100 = scmp.eq.s32.totalorder %s18, 1
      %p101 = por %p99, %p100
      %p102 = scmp.ne.s32.totalorder %s93, %s94
      %p103 = scmp.eq.s32.totalorder %s18, 0
      %p104 = por %p102, %p103
      %p105 = scmp.ne.s32.totalorder %s93, %s94
      %p106 = scmp.eq.s32.totalorder %s19, 1
      %p107 = por %p105, %p106
      %p109 = scmp.ne.s32.totalorder %s94, %s108
      %p110 = scmp.eq.s32.totalorder %s19, 0
      %p111 = por %p109, %p110
      %s113 = sadd.s32 %s112, 1
      %p116 = scmp.eq.s32.totalorder %s13, 1
      %p117 = scmp.ne.s32.totalorder %s112, %s114
      %p118 = scmp.eq.s32.totalorder %s13, 0
      %p119 = por %p117, %p118
      %p120 = scmp.ne.s32.totalorder %s112, %s114
      %p121 = scmp.eq.s32.totalorder %s18, 1
      %p122 = por %p120, %p121
      %p123 = scmp.ne.s32.totalorder %s114, %s115
      %p124 = scmp.eq.s32.totalorder %s18, 0
      %p125 = por %p123, %p124
      %p126 = scmp.ne.s32.totalorder %s114, %s115
      %p127 = scmp.eq.s32.totalorder %s19, 1
      %p128 = por %p126, %p127
      %p130 = scmp.ne.s32.totalorder %s115, %s129
      %p131 = scmp.eq.s32.totalorder %s19, 0
      %p132 = por %p130, %p131
      %s133 = sadd.s32 %s20, %s21
      %s134 = sadd.s32 %s32, %s28
      %s135 = ssub.s32 %s133, %s134
      %p136 = scmp.eq.s32.totalorder %s135, 0
      %s138 = sadd.s32 %s137, 1
      %s139 = scalar_select %p136, %s137, %s138
      %p142 = pneg %p136
      %p143 = scmp.eq.s32.totalorder %s13, 1
      %p144 = por %p142, %p143
      %p145 = scmp.ne.s32.totalorder %s137, %s140
      %p146 = scmp.eq.s32.totalorder %s13, 0
      %p147 = por %p145, %p146
      %p148 = scmp.ne.s32.totalorder %s137, %s140
      %p149 = scmp.eq.s32.totalorder %s18, 1
      %p150 = por %p148, %p149
      %p151 = scmp.ne.s32.totalorder %s140, %s141
      %p152 = scmp.eq.s32.totalorder %s18, 0
      %p153 = por %p151, %p152
      %p154 = scmp.ne.s32.totalorder %s140, %s141
      %p155 = scmp.eq.s32.totalorder %s19, 1
      %p156 = por %p154, %p155
      %p158 = scmp.ne.s32.totalorder %s141, %s157
      %p159 = scmp.eq.s32.totalorder %s19, 0
      %p160 = por %p158, %p159
      %p161 = scmp.le.s32.totalorder 1, %s13
      %p162 = scmp.lt.s32.totalorder %s13, 3
      %p163 = pnand %p161, %p162
      %p164 = pneg %p163
      // Predicated region
      $region9: #{tpu_custom_call.1} parent=5 // pred_check
        _
      $region10: #{tpu_custom_call.1} parent=5 // pred_check_branch
        %166 = sbr.rel (%p163) target = $region12
      $region11: #{tpu_custom_call.1} parent=5 // pred_region
        %s167 = ssub.s32 %s13, 1
        // Predicated region
        $region13: #{tpu_custom_call.1} parent=11 // pred_check
          %p168 = pneg %p104
        $region14: #{tpu_custom_call.1} parent=11 // pred_check_branch
          %170 = sbr.rel (%p168) target = $region16
        $region15: #{tpu_custom_call.1} parent=11 // pred_region
          _
        $region16: #{tpu_custom_call.1} parent=11 // pred_fallthru
          _
        // Predicated region
        $region17: #{tpu_custom_call.1} parent=11 // pred_check
          %p171 = pneg %p125
        $region18: #{tpu_custom_call.1} parent=11 // pred_check_branch
          %173 = sbr.rel (%p171) target = $region20
        $region19: #{tpu_custom_call.1} parent=11 // pred_region
          _
        $region20: #{tpu_custom_call.1} parent=11 // pred_fallthru
          _
      $region12: #{tpu_custom_call.1} parent=5 // pred_fallthru
        _
      %p174 = scmp.lt.s32.totalorder %s13, 2
      // Predicated region
      $region21: #{tpu_custom_call.1} parent=5 // pred_check
        %p175 = pneg %p174
      $region22: #{tpu_custom_call.1} parent=5 // pred_check_branch
        %177 = sbr.rel (%p175) target = $region24
      $region23: #{tpu_custom_call.1} parent=5 // pred_region
        // Predicated region
        $region25: #{tpu_custom_call.1} parent=23 // pred_check
          %p178 = pneg %p49
        $region26: #{tpu_custom_call.1} parent=23 // pred_check_branch
          %180 = sbr.rel (%p178) target = $region28
        $region27: #{tpu_custom_call.1} parent=23 // pred_region
          %s181 = ssub.s32 1, %s20
          %s182 = smul.u32 %s21, %s181
          %s183 = smul.u32 4, %s182
          %p184 = scmp.lt.s32.totalorder %s183, 3
          %s185 = scalar_select %p184, %s183, 3
          %s186 = smul.addr %s185, 8
          %s187 = scalar_lea.vmem %s0, %s186
          %s188 = ssub.s32 1, %s20
          %s189 = smul.u32 %s21, %s188
          %s190 = smul.u32 4, %s189
        $region28: #{tpu_custom_call.1} parent=23 // pred_fallthru
          _
        // Predicated region
        $region29: #{tpu_custom_call.1} parent=23 // pred_check
          %p191 = pneg %p77
        $region30: #{tpu_custom_call.1} parent=23 // pred_check_branch
          %193 = sbr.rel (%p191) target = $region32
        $region31: #{tpu_custom_call.1} parent=23 // pred_region
          %s194 = smul.u32 %s21, %s20
          %s195 = smul.u32 4, %s194
          %p196 = scmp.lt.s32.totalorder %s195, 3
          %s197 = scalar_select %p196, %s195, 3
          %s198 = smul.addr %s197, 8
          %s199 = scalar_lea.vmem %s1, %s198
          %s200 = smul.u32 %s21, %s20
          %s201 = smul.u32 4, %s200
        $region32: #{tpu_custom_call.1} parent=23 // pred_fallthru
          _
      $region24: #{tpu_custom_call.1} parent=5 // pred_fallthru
        _
      %p202 = scmp.le.s32.totalorder 1, %s13
      %p203 = scmp.lt.s32.totalorder %s13, 3
      %p204 = pnand %p202, %p203
      %p205 = pneg %p204
      // Predicated region
      $region33: #{tpu_custom_call.1} parent=5 // pred_check
        _
      $region34: #{tpu_custom_call.1} parent=5 // pred_check_branch
        %207 = sbr.rel (%p204) target = $region36
      $region35: #{tpu_custom_call.1} parent=5 // pred_region
        %s208 = ssub.s32 %s13, 1
        %s209 = ssub.s32 1, %s22
        %s210 = smul.u32 %s23, %s209
        %s211 = smul.u32 4, %s210
        %p212 = scmp.lt.s32.totalorder %s211, 3
        %s213 = scalar_select %p212, %s211, 3
        %s214 = smul.addr %s213, 8
        %s215 = scalar_lea.vmem %s0, %s214
        %p216 = pneg %p55
        %p217 = pneg %p52
        %s218 = smul.u32 %s23, %s22
        %s219 = smul.u32 4, %s218
        %p220 = scmp.lt.s32.totalorder %s219, 3
        %s221 = scalar_select %p220, %s219, 3
        %s222 = smul.addr %s221, 8
        %s223 = scalar_lea.vmem %s1, %s222
        %p224 = pneg %p83
        %p225 = pneg %p80
        %p226 = pneg %p104
        %p227 = pneg %p101
        %p228 = pneg %p125
        %p229 = pneg %p122
        %p230 = pneg %p153
        %p231 = pneg %p150
        %s232 = sand.u32 %s140, 1
        %s233 = scalar_lea.sflag [#allocation3], %s232
        %s234 = sand.u32 %s140, 1
        %s235 = smul.addr %s234, 64
        %s236 = scalar_lea.vmem [#allocation2], %s235
        %s237 = ssub.s32 1, %s22
        %s238 = smul.u32 %s23, %s237
        %s239 = smul.u32 4, %s238
        %p240 = scmp.lt.s32.totalorder %s239, 3
        %s241 = scalar_select %p240, %s239, 3
        %s242 = smul.addr %s241, 8
        %s243 = scalar_lea.vmem %s0, %s242
        %s244 = ssub.s32 1, %s22
        %s245 = smul.u32 %s23, %s244
        %s246 = smul.u32 4, %s245
        %s247 = smul.u32 %s23, %s22
        %s248 = smul.u32 4, %s247
        %p249 = scmp.lt.s32.totalorder %s248, 3
        %s250 = scalar_select %p249, %s248, 3
        %s251 = smul.addr %s250, 8
        %s252 = scalar_lea.vmem %s1, %s251
        %s253 = smul.u32 %s23, %s22
        %s254 = smul.u32 4, %s253
        %s255 = sadd.s32 %s22, %s23
        %s256 = smul.u32 4, %s255
        %p257 = scmp.eq.s32.totalorder %s22, 0
        // Predicated region
        $region37: #{tpu_custom_call.1} parent=35 // pred_check
          %p258 = pneg %p257
        $region38: #{tpu_custom_call.1} parent=35 // pred_check_branch
          %260 = sbr.rel (%p258) target = $region40
        $region39: #{tpu_custom_call.1} parent=35 // pred_region
          %v261 = vld [vmem:[%s243] sm:$0xff]
          %v262 = vld [vmem:[%s243 + $0x8] sm:$0xff]
          %v263 = vld [vmem:[%s243 + $0x10] sm:$0xff]
          %v264 = vld [vmem:[%s243 + $0x18] sm:$0xff]
          %v265 = vld [vmem:[%s2] sm:$0xff]
          %v266 = vld [vmem:[%s2 + $0x8] sm:$0xff]
          %v267 = vld [vmem:[%s2 + $0x10] sm:$0xff]
          %v268 = vld [vmem:[%s2 + $0x18] sm:$0xff]
          %vm269 = vcmask 130048
          %v271 = vsel %vm269, %v261, 0
          %v274 = vsel %vm269, %v262, 0
          %v277 = vsel %vm269, %v263, 0
          %v280 = vsel %vm269, %v264, 0
          %282 = vmatpush.msra.mxu0 0.0
          %283 = vmatpush.msra.mxu0 0.0
          %284 = vmatpush.msra.mxu0 0.0
          %285 = vmatpush.msra.mxu0 0.0
          %286 = vmatpush.msra.mxu0 0.0
          %287 = vmatpush.msra.mxu0 0.0
          %288 = vmatpush.msra.mxu0 0.0
          %289 = vmatpush.msra.mxu0 0.0
          %290 = vmatpush.msra.mxu0 0.0
          %291 = vmatpush.msra.mxu0 0.0
          %292 = vmatpush.msra.mxu0 0.0
          %293 = vmatpush.msra.mxu0 0.0
          %294 = vmatpush.msra.mxu0 0.0
          %295 = vmatpush.msra.mxu0 0.0
          %296 = vmatpush.msra.mxu0 %v267
          %297 = vmatpush.msra.mxu0 %v265
          %298 = vmatmul.f32.gmra.mxu0 %v271
          %v299 = vpop.f32.mrf.mxu0
          %v300 = vadd.f32 0.0, %v299
          %301 = vmatmul.f32.gmra.mxu0 %v274
          %v302 = vpop.f32.mrf.mxu0
          %v303 = vadd.f32 0.0, %v302
          %304 = vmatmul.f32.gmra.mxu0 %v277
          %v305 = vpop.f32.mrf.mxu0
          %v306 = vadd.f32 0.0, %v305
          %307 = vmatmul.f32.gmra.mxu0 %v280
          %v308 = vpop.f32.mrf.mxu0
          %v309 = vadd.f32 0.0, %v308
          %310 = vdwg.mxu0
          %311 = vmatpush.msra.mxu0 0.0
          %312 = vmatpush.msra.mxu0 0.0
          %313 = vmatpush.msra.mxu0 0.0
          %314 = vmatpush.msra.mxu0 0.0
          %315 = vmatpush.msra.mxu0 0.0
          %316 = vmatpush.msra.mxu0 0.0
          %317 = vmatpush.msra.mxu0 0.0
          %318 = vmatpush.msra.mxu0 0.0
          %319 = vmatpush.msra.mxu0 0.0
          %320 = vmatpush.msra.mxu0 0.0
          %321 = vmatpush.msra.mxu0 0.0
          %322 = vmatpush.msra.mxu0 0.0
          %323 = vmatpush.msra.mxu0 0.0
          %324 = vmatpush.msra.mxu0 0.0
          %325 = vmatpush.msra.mxu0 %v268
          %326 = vmatpush.msra.mxu0 %v266
          %327 = vmatmul.f32.gmra.mxu0 %v271
          %v328 = vpop.f32.mrf.mxu0
          %v329 = vadd.f32 0.0, %v328
          %330 = vmatmul.f32.gmra.mxu0 %v274
          %v331 = vpop.f32.mrf.mxu0
          %v332 = vadd.f32 0.0, %v331
          %333 = vmatmul.f32.gmra.mxu0 %v277
          %v334 = vpop.f32.mrf.mxu0
          %v335 = vadd.f32 0.0, %v334
          %336 = vmatmul.f32.gmra.mxu0 %v280
          %v337 = vpop.f32.mrf.mxu0
          %v338 = vadd.f32 0.0, %v337
          %339 = vdwg.mxu0
          %340 = vst [vmem:[%s236] sm:$0xff] %v300
          %341 = vst [vmem:[%s236 + $0x8] sm:$0xff] %v329
          %342 = vst [vmem:[%s236 + $0x10] sm:$0xff] %v303
          %343 = vst [vmem:[%s236 + $0x18] sm:$0xff] %v332
          %344 = vst [vmem:[%s236 + $0x20] sm:$0xff] %v306
          %345 = vst [vmem:[%s236 + $0x28] sm:$0xff] %v335
          %346 = vst [vmem:[%s236 + $0x30] sm:$0xff] %v309
          %347 = vst [vmem:[%s236 + $0x38] sm:$0xff] %v338
        $region40: #{tpu_custom_call.1} parent=35 // pred_fallthru
          _
        %p348 = scmp.eq.s32.totalorder %s22, 1
        // Predicated region
        $region41: #{tpu_custom_call.1} parent=35 // pred_check
          %p349 = pneg %p348
        $region42: #{tpu_custom_call.1} parent=35 // pred_check_branch
          %351 = sbr.rel (%p349) target = $region44
        $region43: #{tpu_custom_call.1} parent=35 // pred_region
          %v352 = vld [vmem:[%s252] sm:$0xff]
          %v353 = vld [vmem:[%s252 + $0x8] sm:$0xff]
          %v354 = vld [vmem:[%s252 + $0x10] sm:$0xff]
          %v355 = vld [vmem:[%s252 + $0x18] sm:$0xff]
          %v356 = vld [vmem:[%s3] sm:$0xff]
          %v357 = vld [vmem:[%s3 + $0x8] sm:$0xff]
          %v358 = vld [vmem:[%s3 + $0x10] sm:$0xff]
          %v359 = vld [vmem:[%s3 + $0x18] sm:$0xff]
          %vm360 = vcmask 130048
          %v362 = vsel %vm360, %v352, 0
          %v365 = vsel %vm360, %v353, 0
          %v368 = vsel %vm360, %v354, 0
          %v371 = vsel %vm360, %v355, 0
          %373 = vmatpush.msra.mxu0 0.0
          %374 = vmatpush.msra.mxu0 0.0
          %375 = vmatpush.msra.mxu0 0.0
          %376 = vmatpush.msra.mxu0 0.0
          %377 = vmatpush.msra.mxu0 0.0
          %378 = vmatpush.msra.mxu0 0.0
          %379 = vmatpush.msra.mxu0 0.0
          %380 = vmatpush.msra.mxu0 0.0
          %381 = vmatpush.msra.mxu0 0.0
          %382 = vmatpush.msra.mxu0 0.0
          %383 = vmatpush.msra.mxu0 0.0
          %384 = vmatpush.msra.mxu0 0.0
          %385 = vmatpush.msra.mxu0 0.0
          %386 = vmatpush.msra.mxu0 0.0
          %387 = vmatpush.msra.mxu0 %v358
          %388 = vmatpush.msra.mxu0 %v356
          %389 = vmatmul.f32.gmra.mxu0 %v362
          %v390 = vpop.f32.mrf.mxu0
          %v391 = vadd.f32 0.0, %v390
          %392 = vmatmul.f32.gmra.mxu0 %v365
          %v393 = vpop.f32.mrf.mxu0
          %v394 = vadd.f32 0.0, %v393
          %395 = vmatmul.f32.gmra.mxu0 %v368
          %v396 = vpop.f32.mrf.mxu0
          %v397 = vadd.f32 0.0, %v396
          %398 = vmatmul.f32.gmra.mxu0 %v371
          %v399 = vpop.f32.mrf.mxu0
          %v400 = vadd.f32 0.0, %v399
          %401 = vdwg.mxu0
          %402 = vmatpush.msra.mxu0 0.0
          %403 = vmatpush.msra.mxu0 0.0
          %404 = vmatpush.msra.mxu0 0.0
          %405 = vmatpush.msra.mxu0 0.0
          %406 = vmatpush.msra.mxu0 0.0
          %407 = vmatpush.msra.mxu0 0.0
          %408 = vmatpush.msra.mxu0 0.0
          %409 = vmatpush.msra.mxu0 0.0
          %410 = vmatpush.msra.mxu0 0.0
          %411 = vmatpush.msra.mxu0 0.0
          %412 = vmatpush.msra.mxu0 0.0
          %413 = vmatpush.msra.mxu0 0.0
          %414 = vmatpush.msra.mxu0 0.0
          %415 = vmatpush.msra.mxu0 0.0
          %416 = vmatpush.msra.mxu0 %v359
          %417 = vmatpush.msra.mxu0 %v357
          %418 = vmatmul.f32.gmra.mxu0 %v362
          %v419 = vpop.f32.mrf.mxu0
          %v420 = vadd.f32 0.0, %v419
          %421 = vmatmul.f32.gmra.mxu0 %v365
          %v422 = vpop.f32.mrf.mxu0
          %v423 = vadd.f32 0.0, %v422
          %424 = vmatmul.f32.gmra.mxu0 %v368
          %v425 = vpop.f32.mrf.mxu0
          %v426 = vadd.f32 0.0, %v425
          %427 = vmatmul.f32.gmra.mxu0 %v371
          %v428 = vpop.f32.mrf.mxu0
          %v429 = vadd.f32 0.0, %v428
          %430 = vdwg.mxu0
          %431 = vst [vmem:[%s236] sm:$0xff] %v391
          %432 = vst [vmem:[%s236 + $0x8] sm:$0xff] %v420
          %433 = vst [vmem:[%s236 + $0x10] sm:$0xff] %v394
          %434 = vst [vmem:[%s236 + $0x18] sm:$0xff] %v423
          %435 = vst [vmem:[%s236 + $0x20] sm:$0xff] %v397
          %436 = vst [vmem:[%s236 + $0x28] sm:$0xff] %v426
          %437 = vst [vmem:[%s236 + $0x30] sm:$0xff] %v400
          %438 = vst [vmem:[%s236 + $0x38] sm:$0xff] %v429
        $region44: #{tpu_custom_call.1} parent=35 // pred_fallthru
          _
        %s439 = sand.u32 %s140, 1
        %s440 = scalar_lea.sflag [#allocation3], %s439
        %s441 = sand.u32 %s140, 1
        %s442 = smul.addr %s441, 64
        %s443 = scalar_lea.vmem [#allocation2], %s442
        // Predicated region
        $region45: #{tpu_custom_call.1} parent=35 // pred_check
          %p444 = pneg %p150
        $region46: #{tpu_custom_call.1} parent=35 // pred_check_branch
          %446 = sbr.rel (%p444) target = $region48
        $region47: #{tpu_custom_call.1} parent=35 // pred_region
          %s447 = sadd.s32 %s22, %s23
          %s448 = smul.u32 4, %s447
          %450 = vsyncadd %s440, 0
          %s451 = smul.addr %s448, 2
          %s452 = smul.addr %s451, 8
          %s453 = scalar_lea.hbm %s4, %s452
          %s454 = sshll.u32 %s443, 4
          %s455 = int_to_ptr.vmem [resolvable:$true] %s454
          %s456 = sshll.u32 %s453, 4
          %s457 = int_to_ptr.hbm [resolvable:$true] %s456
          %462 = dma.vmem_to_hbm [thread:$0]  %s455, 1024, %s457, %s440, 256, 256, 16
        $region48: #{tpu_custom_call.1} parent=35 // pred_fallthru
          _
      $region36: #{tpu_custom_call.1} parent=5 // pred_fallthru
        _
      %p463 = scmp.le.s32.totalorder 2, %s13
      // Predicated region
      $region49: #{tpu_custom_call.1} parent=5 // pred_check
        %p464 = pneg %p463
      $region50: #{tpu_custom_call.1} parent=5 // pred_check_branch
        %466 = sbr.rel (%p464) target = $region52
      $region51: #{tpu_custom_call.1} parent=5 // pred_region
        %s467 = ssub.s32 %s13, 2
        // Predicated region
        $region53: #{tpu_custom_call.1} parent=51 // pred_check
          %p468 = pneg %p156
        $region54: #{tpu_custom_call.1} parent=51 // pred_check_branch
          %470 = sbr.rel (%p468) target = $region56
        $region55: #{tpu_custom_call.1} parent=51 // pred_region
          %s471 = sand.u32 %s141, 1
          %s472 = scalar_lea.sflag [#allocation3], %s471
          %s473 = sand.u32 %s141, 1
          %s474 = smul.addr %s473, 64
          %s475 = scalar_lea.vmem [#allocation2], %s474
          %477 = dma.done %s472, 1024
        $region56: #{tpu_custom_call.1} parent=51 // pred_fallthru
          _
      $region52: #{tpu_custom_call.1} parent=5 // pred_fallthru
        _
    $region6: #{tpu_custom_call.1} parent=1 // loop_footer
      %s17 = sadd.s32 1, %s13
    $region7: #{tpu_custom_call.1} parent=1 // loop_footer_branch
      %12 = sbr.rel target = $region3
    $region8: #{tpu_custom_call.1} parent=1 // loop_exit
      _
    %478 = vsyncpa [#allocation3], 1
    %s479 = scalar_lea.sflag [#allocation3], 1
    %480 = vsyncpa %s479, 1

</llo_original>
